<compile_context>
chip_gen: v7x
topology: tpu7x:2x2x1
jax: 0.10.0
libtpu: 0.0.40
codegen_flags: <defaults>
</compile_context>

<pallas_src>
import math
import functools

import jax
import jax.numpy as jnp
from jax import lax
from jax.experimental import pallas as pl
from jax.experimental.pallas import tpu as pltpu


# ---------------------------------------------------------------------------
# Config
# ---------------------------------------------------------------------------

# bf16 matmul inputs (f32 accumulation). Set to jnp.float32 for bit-exact f32.
# TODO(synk): bf16 operands deviate slightly from the f32 PyTorch reference.
_MATMUL_DTYPE = jnp.bfloat16

_TM = _TN = _TK = 512      # dense tile targets (full dim when smaller)
_TQ = 256                  # attention query-block rows
_LN_ROWS = 256             # standalone layer-norm rows per grid step
# 48 MiB scoped VMEM: fits v7x (64 MiB physical); v5e/v6e have 128 MiB headroom.
_VMEM_LIMIT = 48 * 1024 * 1024


def _round_up(x, m):
    return ((x + m - 1) // m) * m


def _pad2(a, rows, cols):
    r, c = a.shape
    if r == rows and c == cols:
        return a
    return jnp.pad(a, ((0, rows - r), (0, cols - c)))


# ---------------------------------------------------------------------------
# Dense kernel: y = [LN(x)] @ w [+ b] [, relu] [, + residual]
# ---------------------------------------------------------------------------

def _dense_kernel(*refs, activation, has_bias, has_ln, has_residual, ln_eps):
    refs = list(refs)
    x_ref = refs.pop(0)
    w_ref = refs.pop(0)
    if has_bias:
        b_ref = refs.pop(0)
    if has_ln:
        g_ref = refs.pop(0)
        beta_ref = refs.pop(0)
    if has_residual:
        res_ref = refs.pop(0)
    o_ref, acc_ref = refs

    @pl.when(pl.program_id(2) == 0)
    def _():
        acc_ref[...] = jnp.zeros_like(acc_ref)

    x = x_ref[...]
    if has_ln:
        # Fused LayerNorm prologue (requires the full feature dim in this block).
        xf = x.astype(jnp.float32)
        d = xf.shape[-1]
        mean = jnp.mean(xf, axis=-1, keepdims=True)
        diff = xf - mean
        var = jnp.sum(diff * diff, axis=-1, keepdims=True) / (d - 1)  # torch.std: N-1
        inv = 1.0 / (jnp.sqrt(var) + ln_eps)                          # eps on std
        x = g_ref[...] * (diff * inv) + beta_ref[...]

    acc_ref[...] += jnp.dot(x.astype(_MATMUL_DTYPE),
                            w_ref[...].astype(_MATMUL_DTYPE),
                            preferred_element_type=jnp.float32)

    @pl.when(pl.program_id(2) == pl.num_programs(2) - 1)
    def _():
        y = acc_ref[...]
        if has_bias:
            y = y + b_ref[...]
        if activation == "relu":
            y = jnp.maximum(y, 0.0)
        if has_residual:
            y = y + res_ref[...].astype(jnp.float32)
        o_ref[...] = y.astype(o_ref.dtype)


def dense(x2d, w, b=None, activation=None, residual=None, ln=None,
          out_dtype=jnp.float32, ln_eps=1e-6):
    """y = [LN(x2d)] @ w [+ b] (+ fused ReLU / residual). x2d:(M,K) w:(K,N) b:(N,)."""
    M, K = x2d.shape
    N = w.shape[1]

    if ln is not None and K > _TK:
        # TODO(synk): LN fusion needs the full feature dim in one K block; fall
        # back to a standalone LN pass for very large d_model.
        x2d = _layer_norm_2d(x2d, ln[0], ln[1], eps=ln_eps, out_dtype=_MATMUL_DTYPE)
        ln = None

    tm = M if M <= _TM else _TM
    tk = K if K <= _TK else _TK
    tn = N if N <= _TN else _TN
    Mp, Kp, Np = _round_up(M, tm), _round_up(N * 0 + K, tk), _round_up(N, tn)

    operands = [_pad2(x2d, Mp, Kp), _pad2(w, Kp, Np)]
    in_specs = [
        pl.BlockSpec((tm, tk), lambda i, j, k: (i, k)),
        pl.BlockSpec((tk, tn), lambda i, j, k: (k, j)),
    ]
    has_bias = b is not None
    if has_bias:
        operands.append(_pad2(b.reshape(1, N), 1, Np))
        in_specs.append(pl.BlockSpec((1, tn), lambda i, j, k: (0, j)))
    has_ln = ln is not None
    if has_ln:
        g, beta = ln
        operands.append(g.reshape(1, K))
        operands.append(beta.reshape(1, K))
        in_specs.append(pl.BlockSpec((1, K), lambda i, j, k: (0, 0)))
        in_specs.append(pl.BlockSpec((1, K), lambda i, j, k: (0, 0)))
    has_res = residual is not None
    if has_res:
        operands.append(_pad2(residual, Mp, Np))
        in_specs.append(pl.BlockSpec((tm, tn), lambda i, j, k: (i, j)))

    kernel = functools.partial(_dense_kernel, activation=activation,
                               has_bias=has_bias, has_ln=has_ln,
                               has_residual=has_res, ln_eps=ln_eps)
    out = pl.pallas_call(
        kernel,
        grid=(Mp // tm, Np // tn, Kp // tk),
        in_specs=in_specs,
        out_specs=pl.BlockSpec((tm, tn), lambda i, j, k: (i, j)),
        out_shape=jax.ShapeDtypeStruct((Mp, Np), out_dtype),
        scratch_shapes=[pltpu.VMEM((tm, tn), jnp.float32)],
        compiler_params=pltpu.CompilerParams(
            dimension_semantics=("parallel", "parallel", "arbitrary"),
            vmem_limit_bytes=_VMEM_LIMIT,
        ),
    )(*operands)

    if Mp != M or Np != N:
        out = out[:M, :N]
    return out


# ---------------------------------------------------------------------------
# Standalone LayerNorm (only where the output has multiple consumers)
# ---------------------------------------------------------------------------

def _layernorm_kernel(x_ref, g_ref, b_ref, o_ref, *, eps):
    x = x_ref[...].astype(jnp.float32)
    d = x.shape[-1]
    mean = jnp.mean(x, axis=-1, keepdims=True)
    diff = x - mean
    var = jnp.sum(diff * diff, axis=-1, keepdims=True) / (d - 1)
    inv = 1.0 / (jnp.sqrt(var) + eps)
    o_ref[...] = (g_ref[...] * (diff * inv) + b_ref[...]).astype(o_ref.dtype)


def _layer_norm_2d(x2, gamma, beta, eps=1e-6, out_dtype=jnp.float32):
    M, D = x2.shape
    rows = M if M <= _LN_ROWS else _LN_ROWS
    Mp = _round_up(M, rows)
    xp = _pad2(x2, Mp, D)
    out = pl.pallas_call(
        functools.partial(_layernorm_kernel, eps=eps),
        grid=(Mp // rows,),
        in_specs=[
            pl.BlockSpec((rows, D), lambda i: (i, 0)),
            pl.BlockSpec((1, D), lambda i: (0, 0)),
            pl.BlockSpec((1, D), lambda i: (0, 0)),
        ],
        out_specs=pl.BlockSpec((rows, D), lambda i: (i, 0)),
        out_shape=jax.ShapeDtypeStruct((Mp, D), out_dtype),
        compiler_params=pltpu.CompilerParams(dimension_semantics=("parallel",)),
    )(xp, gamma.reshape(1, D), beta.reshape(1, D))
    if Mp != M:
        out = out[:M]
    return out


def layer_norm(x, gamma, beta, eps=1e-6, out_dtype=jnp.float32):
    B, S, D = x.shape
    return _layer_norm_2d(x.reshape(B * S, D), gamma, beta, eps,
                          out_dtype).reshape(B, S, D)


# ---------------------------------------------------------------------------
# Attention kernel: grid = (batch, head, Sq-block); per-head dk-wide blocks
# ---------------------------------------------------------------------------

def _attention_kernel(q_ref, k_ref, v_ref, o_ref, w_ref, *, inv_scale):
    q = q_ref[0, 0]            # (tq, dk) bf16
    k = k_ref[0, 0]            # (Sk, dk) bf16
    v = v_ref[0, 0]            # (Sk, dk) bf16
    # (tq,dk) x (Sk,dk) contracted on dk -> (tq,Sk); no XLU transpose of K.
    s = lax.dot_general(q, k, (((1,), (1,)), ((), ())),
                        preferred_element_type=jnp.float32) * inv_scale
    m = jnp.max(s, axis=-1, keepdims=True)
    e = jnp.exp(s - m)
    p = e / jnp.sum(e, axis=-1, keepdims=True)   # exact: returned weights sum to 1
    w_ref[0, 0] = p
    o_ref[0, 0] = jnp.dot(p.astype(v.dtype), v,
                          preferred_element_type=jnp.float32).astype(o_ref.dtype)


def attention(q, k, v, scale):
    """q:(B,H,Sq,dk), k/v:(B,H,Sk,dk) (bf16). Returns (out bf16, weights f32)."""
    B, H, Sq, dk = q.shape
    Sk = k.shape[2]
    tq = Sq if Sq <= _TQ else _TQ
    Sqp = _round_up(Sq, tq)
    if Sqp != Sq:
        q = jnp.pad(q, ((0, 0), (0, 0), (0, Sqp - Sq), (0, 0)))

    # TODO(synk): for very long Sk additionally tile Sk with an online softmax;
    # the full (tq, Sk) weights row-block is fine at moderate sequence lengths.
    out, weights = pl.pallas_call(
        functools.partial(_attention_kernel, inv_scale=1.0 / scale),
        grid=(B, H, Sqp // tq),
        in_specs=[
            pl.BlockSpec((1, 1, tq, dk), lambda b, h, i: (b, h, i, 0)),
            pl.BlockSpec((1, 1, Sk, dk), lambda b, h, i: (b, h, 0, 0)),
            pl.BlockSpec((1, 1, Sk, dk), lambda b, h, i: (b, h, 0, 0)),
        ],
        out_specs=[
            pl.BlockSpec((1, 1, tq, dk), lambda b, h, i: (b, h, i, 0)),
            pl.BlockSpec((1, 1, tq, Sk), lambda b, h, i: (b, h, i, 0)),
        ],
        out_shape=[
            jax.ShapeDtypeStruct((B, H, Sqp, dk), q.dtype),
            jax.ShapeDtypeStruct((B, H, Sqp, Sk), jnp.float32),
        ],
        compiler_params=pltpu.CompilerParams(
            dimension_semantics=("parallel", "parallel", "parallel"),
            vmem_limit_bytes=_VMEM_LIMIT,
        ),
    )(q, k, v)
    if Sqp != Sq:
        out = out[:, :, :Sq]
        weights = weights[:, :, :Sq]
    return out, weights


# ---------------------------------------------------------------------------
# Model building blocks
# ---------------------------------------------------------------------------

def _split_heads(x, B, S, H, dk):
    # (B, S, H*dk) -> (B, H, S, dk); matches PyTorch .view().transpose(1, 2)
    return x.reshape(B, S, H, dk).transpose(0, 2, 1, 3)


def _merge_heads(x, B, S, H, dk):
    # (B, H, S, dk) -> (B*S, H*dk)
    return x.transpose(0, 2, 1, 3).reshape(B * S, H * dk)


def self_attention_block(p, x, ln_g, ln_b, num_heads):
    """Pre-norm self-attention. LN fused into the fused-QKV projection; residual
    add fused into the W_o projection."""
    B, S, D = x.shape
    H, dk = num_heads, D // num_heads
    x2 = x.reshape(B * S, D)

    qkv = dense(x2, p["w_qkv"], ln=(ln_g, ln_b), out_dtype=_MATMUL_DTYPE)
    qkv = qkv.reshape(B, S, 3, H, dk).transpose(2, 0, 3, 1, 4)   # (3,B,H,S,dk)
    out_h, weights = attention(qkv[0], qkv[1], qkv[2], math.sqrt(dk))

    heads = _merge_heads(out_h, B, S, H, dk)
    out = dense(heads, p["wo"], p["bo"], residual=x2)
    return out.reshape(B, S, D), weights


def cross_attention_block(p, x, enc, ln_g, ln_b, num_heads):
    """Pre-norm cross-attention (Q from x w/ fused LN; fused K/V from encoder)."""
    B, Sq, D = x.shape
    Sk = enc.shape[1]
    H, dk = num_heads, D // num_heads
    x2 = x.reshape(B * Sq, D)

    q = dense(x2, p["w_q"], ln=(ln_g, ln_b), out_dtype=_MATMUL_DTYPE)
    q = _split_heads(q.reshape(B, Sq, D), B, Sq, H, dk)

    kv = dense(enc.reshape(B * Sk, D), p["w_kv"], out_dtype=_MATMUL_DTYPE)
    kv = kv.reshape(B, Sk, 2, H, dk).transpose(2, 0, 3, 1, 4)    # (2,B,H,Sk,dk)

    out_h, weights = attention(q, kv[0], kv[1], math.sqrt(dk))
    heads = _merge_heads(out_h, B, Sq, H, dk)
    out = dense(heads, p["wo"], p["bo"], residual=x2)
    return out.reshape(B, Sq, D), weights


def feed_forward(p, x, ln_g, ln_b):
    B, S, D = x.shape
    x2 = x.reshape(B * S, D)
    h = dense(x2, p["w1"], p["b1"], activation="relu", ln=(ln_g, ln_b),
              out_dtype=_MATMUL_DTYPE)
    o = dense(h, p["w2"], p["b2"], residual=x2)
    return o.reshape(B, S, D)


def transformer_forward(params, src, tgt):
    d_model = params["d_model"]
    num_heads = params["num_heads"]
    pe = params["pe"]

    src_emb = jnp.take(params["src_emb"], src, axis=0) * math.sqrt(d_model)
    tgt_emb = jnp.take(params["tgt_emb"], tgt, axis=0) * math.sqrt(d_model)
    x_src = src_emb + pe[None, : src.shape[1], :]
    x_tgt = tgt_emb + pe[None, : tgt.shape[1], :]
    # TODO(synk): dropout is identity (eval-mode); attention masks default to None.

    # ---- encoder ----
    enc_weights = []
    x = x_src
    for lp in params["encoder_layers"]:
        x, w = self_attention_block(lp["attn"], x, lp["ln1_g"], lp["ln1_b"], num_heads)
        x = feed_forward(lp["ff"], x, lp["ln2_g"], lp["ln2_b"])
        enc_weights.append(w)
    # Standalone LN: its output is reused by every decoder layer; emit bf16 since
    # its only consumers are the cross-attention K/V matmuls.
    encoder_output = layer_norm(x, params["enc_norm_g"], params["enc_norm_b"],
                                out_dtype=_MATMUL_DTYPE)

    # ---- decoder ----
    dec_self_w, dec_cross_w = [], []
    x = x_tgt
    for lp in params["decoder_layers"]:
        x, sw = self_attention_block(lp["self_attn"], x, lp["ln1_g"], lp["ln1_b"],
                                     num_heads)
        x, cw = cross_attention_block(lp["cross_attn"], x, encoder_output,
                                      lp["ln2_g"], lp["ln2_b"], num_heads)
        x = feed_forward(lp["ff"], x, lp["ln3_g"], lp["ln3_b"])
        dec_self_w.append(sw)
        dec_cross_w.append(cw)

    B, St, D = x.shape
    # Final decoder LayerNorm fused into the output projection (single consumer).
    logits = dense(x.reshape(B * St, D), params["out_w"], params["out_b"],
                   ln=(params["dec_norm_g"], params["dec_norm_b"]))
    logits = logits.reshape(B, St, params["vocab_size"])

    return logits, {
        "encoder_attention": enc_weights,
        "decoder_self_attention": dec_self_w,
        "decoder_cross_attention": dec_cross_w,
    }


# ---------------------------------------------------------------------------
# Deterministic parameter init (Xavier uniform; matmul weights pre-cast to bf16)
# ---------------------------------------------------------------------------

def _xavier(key, shape):
    limit = math.sqrt(6.0 / (shape[0] + shape[1]))
    return jax.random.uniform(key, shape, jnp.float32, -limit, limit)


def _make_positional_encoding(max_len, d_model):
    position = jnp.arange(max_len, dtype=jnp.float32)[:, None]
    div_term = jnp.exp(
        jnp.arange(0, d_model, 2, dtype=jnp.float32) * (-math.log(10000.0) / d_model))
    pe = jnp.zeros((max_len, d_model), jnp.float32)
    pe = pe.at[:, 0::2].set(jnp.sin(position * div_term))
    pe = pe.at[:, 1::2].set(jnp.cos(position * div_term))
    return pe


def _init_mha(key, d_model, fused_qkv):
    k = jax.random.split(key, 4)
    wq = _xavier(k[0], (d_model, d_model))
    wk = _xavier(k[1], (d_model, d_model))
    wv = _xavier(k[2], (d_model, d_model))
    p = {
        "wo": _xavier(k[3], (d_model, d_model)).astype(_MATMUL_DTYPE),
        "bo": jnp.zeros((d_model,), jnp.float32),
    }
    if fused_qkv:                                   # self-attention: one (D,3D) matmul
        p["w_qkv"] = jnp.concatenate([wq, wk, wv], axis=1).astype(_MATMUL_DTYPE)
    else:                                           # cross-attention: Q and fused K/V
        p["w_q"] = wq.astype(_MATMUL_DTYPE)
        p["w_kv"] = jnp.concatenate([wk, wv], axis=1).astype(_MATMUL_DTYPE)
    return p


def _init_ffn(key, d_model, d_ff):
    k = jax.random.split(key, 2)
    return {
        "w1": _xavier(k[0], (d_model, d_ff)).astype(_MATMUL_DTYPE),
        "b1": jnp.zeros((d_ff,), jnp.float32),
        "w2": _xavier(k[1], (d_ff, d_model)).astype(_MATMUL_DTYPE),
        "b2": jnp.zeros((d_model,), jnp.float32),
    }


def init_params(key, vocab_size, d_model, num_heads, num_enc, num_dec, d_ff, max_len):
    keys = jax.random.split(key, 3 + num_enc + num_dec)
    params = {
        "d_model": d_model,
        "num_heads": num_heads,
        "vocab_size": vocab_size,
        "pe": _make_positional_encoding(max_len, d_model),
        "src_emb": _xavier(keys[0], (vocab_size, d_model)),
        "tgt_emb": _xavier(keys[1], (vocab_size, d_model)),
        "out_w": _xavier(keys[2], (d_model, vocab_size)).astype(_MATMUL_DTYPE),
        "out_b": jnp.zeros((vocab_size,), jnp.float32),
        "enc_norm_g": jnp.ones((d_model,), jnp.float32),
        "enc_norm_b": jnp.zeros((d_model,), jnp.float32),
        "dec_norm_g": jnp.ones((d_model,), jnp.float32),
        "dec_norm_b": jnp.zeros((d_model,), jnp.float32),
        "encoder_layers": [],
        "decoder_layers": [],
    }
    for i in range(num_enc):
        ks = jax.random.split(keys[3 + i], 2)
        params["encoder_layers"].append({
            "attn": _init_mha(ks[0], d_model, fused_qkv=True),
            "ff": _init_ffn(ks[1], d_model, d_ff),
            "ln1_g": jnp.ones((d_model,), jnp.float32),
            "ln1_b": jnp.zeros((d_model,), jnp.float32),
            "ln2_g": jnp.ones((d_model,), jnp.float32),
            "ln2_b": jnp.zeros((d_model,), jnp.float32),
        })
    for i in range(num_dec):
        ks = jax.random.split(keys[3 + num_enc + i], 3)
        params["decoder_layers"].append({
            "self_attn": _init_mha(ks[0], d_model, fused_qkv=True),
            "cross_attn": _init_mha(ks[1], d_model, fused_qkv=False),
            "ff": _init_ffn(ks[2], d_model, d_ff),
            "ln1_g": jnp.ones((d_model,), jnp.float32),
            "ln1_b": jnp.zeros((d_model,), jnp.float32),
            "ln2_g": jnp.ones((d_model,), jnp.float32),
            "ln2_b": jnp.zeros((d_model,), jnp.float32),
            "ln3_g": jnp.ones((d_model,), jnp.float32),
            "ln3_b": jnp.zeros((d_model,), jnp.float32),
        })
    return params


# ---------------------------------------------------------------------------
# Main
# ---------------------------------------------------------------------------

if __name__ == "__main__":
    vocab_size = 64
    d_model = 32
    num_heads = 4
    d_ff = 64
    num_encoder_layers = 2
    num_decoder_layers = 2
    max_len = 64
    batch, src_len, tgt_len = 2, 8, 8

    params = init_params(
        jax.random.PRNGKey(0),
        vocab_size, d_model, num_heads,
        num_encoder_layers, num_decoder_layers, d_ff, max_len,
    )

    k_src, k_tgt = jax.random.split(jax.random.PRNGKey(0) + 1)
    src = jax.random.randint(k_src, (batch, src_len), 0, vocab_size)
    tgt = jax.random.randint(k_tgt, (batch, tgt_len), 0, vocab_size)

    logits, attn = transformer_forward(params, src, tgt)
    jax.block_until_ready(logits)

    assert logits.shape == (batch, tgt_len, vocab_size)
    assert len(attn["encoder_attention"]) == num_encoder_layers
    assert attn["encoder_attention"][0].shape == (batch, num_heads, src_len, src_len)
    assert attn["decoder_self_attention"][0].shape == (batch, num_heads, tgt_len, tgt_len)
    assert attn["decoder_cross_attention"][0].shape == (batch, num_heads, tgt_len, src_len)
    print("KERNEL_OK")
</pallas_src>

<mosaic_0001>
module attributes {stable_mosaic.version = 11 : i64} {
  func.func @_dense_kernel(%arg0: i32, %arg1: i32, %arg2: i32, %arg3: memref<16x32xf32, #tpu.memory_space<vmem>>, %arg4: memref<32x96xbf16, #tpu.memory_space<vmem>>, %arg5: memref<1x32xf32, #tpu.memory_space<vmem>>, %arg6: memref<1x32xf32, #tpu.memory_space<vmem>>, %arg7: memref<16x96xbf16, #tpu.memory_space<vmem>>, %arg8: memref<16x96xf32, #tpu.memory_space<vmem>>) attributes {dimension_semantics = [#tpu.dimension_semantics<parallel>, #tpu.dimension_semantics<parallel>, #tpu.dimension_semantics<arbitrary>], iteration_bounds = array<i64: 1, 1, 1>, scalar_prefetch = 0 : i64, scratch_operands = 1 : i64, tpu.core_type = #tpu.core_type<tc>, window_params = [{transform_indices = @transform_0, window_bounds = array<i64: 16, 32>}, {transform_indices = @transform_1, window_bounds = array<i64: 32, 96>}, {pipeline_mode = #tpu.pipeline_mode<synchronous>, transform_indices = @transform_2, window_bounds = array<i64: 1, 32>}, {pipeline_mode = #tpu.pipeline_mode<synchronous>, transform_indices = @transform_3, window_bounds = array<i64: 1, 32>}, {transform_indices = @transform_4, window_bounds = array<i64: 16, 96>}]} {
    %c0_i32 = arith.constant 0 : i32
    %0 = arith.cmpi eq, %arg2, %c0_i32 : i32
    %1 = arith.extui %0 : i1 to i32
    %c0_i32_0 = arith.constant 0 : i32
    %2 = arith.cmpi ne, %1, %c0_i32_0 : i32
    scf.if %2 {
      %cst_20 = arith.constant 0.000000e+00 : f32
      %37 = vector.broadcast %cst_20 : f32 to vector<16x96xf32>
      %c0_21 = arith.constant 0 : index
      %c0_22 = arith.constant 0 : index
      %38 = vector.load %arg8[%c0_21, %c0_22] : memref<16x96xf32, #tpu.memory_space<vmem>>, vector<16x96xf32>
      tpu.vector_store %arg8[%c0_21, %c0_22], %37 {strides = array<i32>} : memref<16x96xf32, #tpu.memory_space<vmem>>, vector<16x96xf32>,
    } else {
    }
    %c0 = arith.constant 0 : index
    %c0_1 = arith.constant 0 : index
    %3 = vector.load %arg3[%c0, %c0_1] : memref<16x32xf32, #tpu.memory_space<vmem>>, vector<16x32xf32>
    %cst = arith.constant dense<0.000000e+00> : vector<16xf32>
    %4 = vector.multi_reduction <add>, %3, %cst [1] : vector<16x32xf32> to vector<16xf32>
    %5 = vector.shape_cast %4 : vector<16xf32> to vector<16x1xf32>
    %cst_2 = arith.constant 3.200000e+01 : f32
    %6 = vector.broadcast %cst_2 : f32 to vector<16x1xf32>
    %7 = arith.divf %5, %6 : vector<16x1xf32>
    %8 = vector.broadcast %7 : vector<16x1xf32> to vector<16x32xf32>
    %9 = arith.subf %3, %8 : vector<16x32xf32>
    %10 = arith.mulf %9, %9 : vector<16x32xf32>
    %cst_3 = arith.constant dense<0.000000e+00> : vector<16xf32>
    %11 = vector.multi_reduction <add>, %10, %cst_3 [1] : vector<16x32xf32> to vector<16xf32>
    %12 = vector.shape_cast %11 : vector<16xf32> to vector<16x1xf32>
    %cst_4 = arith.constant 3.100000e+01 : f32
    %13 = vector.broadcast %cst_4 : f32 to vector<16x1xf32>
    %14 = arith.divf %12, %13 : vector<16x1xf32>
    %15 = math.sqrt %14 : vector<16x1xf32>
    %cst_5 = arith.constant 9.99999997E-7 : f32
    %16 = vector.broadcast %cst_5 : f32 to vector<16x1xf32>
    %17 = arith.addf %15, %16 : vector<16x1xf32>
    %cst_6 = arith.constant 1.000000e+00 : f32
    %18 = vector.broadcast %cst_6 : f32 to vector<16x1xf32>
    %19 = arith.divf %18, %17 : vector<16x1xf32>
    %c0_7 = arith.constant 0 : index
    %c0_8 = arith.constant 0 : index
    %20 = vector.load %arg5[%c0_7, %c0_8] : memref<1x32xf32, #tpu.memory_space<vmem>>, vector<1x32xf32>
    %21 = vector.broadcast %19 : vector<16x1xf32> to vector<16x32xf32>
    %22 = arith.mulf %9, %21 : vector<16x32xf32>
    %23 = vector.broadcast %20 : vector<1x32xf32> to vector<16x32xf32>
    %24 = arith.mulf %23, %22 : vector<16x32xf32>
    %c0_9 = arith.constant 0 : index
    %c0_10 = arith.constant 0 : index
    %25 = vector.load %arg6[%c0_9, %c0_10] : memref<1x32xf32, #tpu.memory_space<vmem>>, vector<1x32xf32>
    %26 = vector.broadcast %25 : vector<1x32xf32> to vector<16x32xf32>
    %27 = arith.addf %24, %26 : vector<16x32xf32>
    %c0_11 = arith.constant 0 : index
    %c0_12 = arith.constant 0 : index
    %28 = vector.load %arg8[%c0_11, %c0_12] : memref<16x96xf32, #tpu.memory_space<vmem>>, vector<16x96xf32>
    %29 = arith.truncf %27 : vector<16x32xf32> to vector<16x32xbf16>
    %c0_13 = arith.constant 0 : index
    %c0_14 = arith.constant 0 : index
    %30 = vector.load %arg4[%c0_13, %c0_14] : memref<32x96xbf16, #tpu.memory_space<vmem>>, vector<32x96xbf16>
    %cst_15 = arith.constant dense<0.000000e+00> : vector<16x96xf32>
    %31 = tpu.matmul %29, %30, %cst_15 {dimension_numbers = #tpu.dot_dimension_numbers<[1], [0], [0], [1], [0, 0, 1, 1], [], []>} : vector<16x32xbf16>, vector<32x96xbf16>, vector<16x96xf32> -> vector<16x96xf32>
    %32 = arith.addf %28, %31 : vector<16x96xf32>
    %c0_16 = arith.constant 0 : index
    %c0_17 = arith.constant 0 : index
    %33 = vector.load %arg8[%c0_16, %c0_17] : memref<16x96xf32, #tpu.memory_space<vmem>>, vector<16x96xf32>
    tpu.vector_store %arg8[%c0_16, %c0_17], %32 {strides = array<i32>} : memref<16x96xf32, #tpu.memory_space<vmem>>, vector<16x96xf32>,
    %c0_i32_18 = arith.constant 0 : i32
    %34 = arith.cmpi eq, %arg2, %c0_i32_18 : i32
    %35 = arith.extui %34 : i1 to i32
    %c0_i32_19 = arith.constant 0 : i32
    %36 = arith.cmpi ne, %35, %c0_i32_19 : i32
    scf.if %36 {
      %c0_20 = arith.constant 0 : index
      %c0_21 = arith.constant 0 : index
      %37 = vector.load %arg8[%c0_20, %c0_21] : memref<16x96xf32, #tpu.memory_space<vmem>>, vector<16x96xf32>
      %38 = arith.truncf %37 : vector<16x96xf32> to vector<16x96xbf16>
      %c0_22 = arith.constant 0 : index
      %c0_23 = arith.constant 0 : index
      %39 = vector.load %arg7[%c0_22, %c0_23] : memref<16x96xbf16, #tpu.memory_space<vmem>>, vector<16x96xbf16>
      tpu.vector_store %arg7[%c0_22, %c0_23], %38 {strides = array<i32>} : memref<16x96xbf16, #tpu.memory_space<vmem>>, vector<16x96xbf16>,
    } else {
    }
    return
  }
  func.func @transform_0(%arg0: i32, %arg1: i32, %arg2: i32) -> (i32, i32) {
    %c0_i32 = arith.constant 0 : i32
    return %arg0, %arg2 : i32, i32
  }
  func.func @transform_1(%arg0: i32, %arg1: i32, %arg2: i32) -> (i32, i32) {
    %c0_i32 = arith.constant 0 : i32
    return %arg2, %arg1 : i32, i32
  }
  func.func @transform_2(%arg0: i32, %arg1: i32, %arg2: i32) -> (i32, i32) {
    %c0_i32 = arith.constant 0 : i32
    %c0_i32_0 = arith.constant 0 : i32
    %c0_i32_1 = arith.constant 0 : i32
    return %c0_i32, %c0_i32_0 : i32, i32
  }
  func.func @transform_3(%arg0: i32, %arg1: i32, %arg2: i32) -> (i32, i32) {
    %c0_i32 = arith.constant 0 : i32
    %c0_i32_0 = arith.constant 0 : i32
    %c0_i32_1 = arith.constant 0 : i32
    return %c0_i32, %c0_i32_0 : i32, i32
  }
  func.func @transform_4(%arg0: i32, %arg1: i32, %arg2: i32) -> (i32, i32) {
    %c0_i32 = arith.constant 0 : i32
    return %arg0, %arg1 : i32, i32
  }
}

</mosaic_0001>

<llo_original>
// kernel: tpu_custom_call.1
$region0: #{tpu_custom_call.1}
  #allocation0 [shape = 'u32[]', space=smem, size = 0x4, offset = 0x4, fixed_abs, tag = 'smem constant byte address 0x4 - core index']
  #allocation1 [shape = 'u32[144,128]{1,0:T(1,128)}', space=vmem, size = 0x12000, scoped, tag = 'internal scratch']
  #allocation2 [shape = 'f32[16,96]{1,0:T(8,128)}', space=vmem, size = 0x2000, scoped, tag = 'scratch operand']
  %s0 = inlined_call_operand.hbm [shape: f32[16,32], index: 0, kind: input, shape index: {}]
  %s1 = inlined_call_operand.hbm [shape: bf16[32,96], index: 1, kind: input, shape index: {}]
  %s2 = inlined_call_operand.vmem [shape: f32[1,32], index: 2, kind: input, shape index: {}]
  %s3 = inlined_call_operand.vmem [shape: f32[1,32], index: 3, kind: input, shape index: {}]
  %s4 = inlined_call_operand.hbm [shape: bf16[16,96], index: 4, kind: output, shape index: {}]
  %s5 = sld [smem:[#allocation0]]
  $region42: #{tpu_custom_call.1} parent=0
    _
  %s7 = ssub.s32 1, %s5
  %s8 = scalar_select 0, %s7, %s5
  $region1: #{tpu_custom_call.1} parent=0
    #allocation3 [shape = 'u8[8192]{0}', space=vmem, size = 0x2000, scoped, tag = 'input window, operand 0, single buffered']
    #allocation4 [shape = 's32[1]{0}', space=sflag, size = 0x4, scoped, tag = 'scoped memory for tpu_custom_call.1']
    #allocation5 [shape = 's32[1]{0}', space=sflag, size = 0x4, scoped, tag = 'scoped memory for tpu_custom_call.1']
    #allocation6 [shape = 'u8[8192]{0}', space=vmem, size = 0x2000, scoped, tag = 'input window, operand 1, single buffered']
    #allocation7 [shape = 's32[1]{0}', space=sflag, size = 0x4, scoped, tag = 'scoped memory for tpu_custom_call.1']
    #allocation8 [shape = 'u8[4096]{0}', space=vmem, size = 0x1000, scoped, tag = 'output window, operand 0, single buffered']
    %9 = vsyncpa [#allocation4], 0
    %10 = vsyncpa [#allocation7], 0
    %11 = vsyncpa [#allocation5], 0
    // Predicated region
    $region2: #{tpu_custom_call.1} parent=1 // pred_check
      _
    $region3: #{tpu_custom_call.1} parent=1 // pred_check_branch
      %13 = sbr.rel (0) target = $region5
    $region4: #{tpu_custom_call.1} parent=1 // pred_region
      %s15 = ssub.s32 256, 256
      %16 = vsyncadd [#allocation4], %s15
      %s17 = sshll.u32 [#allocation3], 4
      %s18 = int_to_ptr.vmem [resolvable:$true] %s17
      %23 = dma.hbm_to_vmem [thread:$0]  %s0, 256, %s18, [#allocation4], 128, 128, 8
    $region5: #{tpu_custom_call.1} parent=1 // pred_fallthru
      _
    // Predicated region
    $region6: #{tpu_custom_call.1} parent=1 // pred_check
      _
    $region7: #{tpu_custom_call.1} parent=1 // pred_check_branch
      %25 = sbr.rel (0) target = $region9
    $region8: #{tpu_custom_call.1} parent=1 // pred_region
      %s27 = ssub.s32 256, 256
      %28 = vsyncadd [#allocation7], %s27
      %s29 = sshll.u32 [#allocation6], 4
      %s30 = int_to_ptr.vmem [resolvable:$true] %s29
      %35 = dma.hbm_to_vmem [thread:$0]  %s1, 256, %s30, [#allocation7], 64, 64, 4
    $region9: #{tpu_custom_call.1} parent=1 // pred_fallthru
      _
    // Predicated region
    $region10: #{tpu_custom_call.1} parent=1 // pred_check
      _
    $region11: #{tpu_custom_call.1} parent=1 // pred_check_branch
      %37 = sbr.rel (0) target = $region13
    $region12: #{tpu_custom_call.1} parent=1 // pred_region
      _
    $region13: #{tpu_custom_call.1} parent=1 // pred_fallthru
      _
    // Predicated region
    $region14: #{tpu_custom_call.1} parent=1 // pred_check
      _
    $region15: #{tpu_custom_call.1} parent=1 // pred_check_branch
      %39 = sbr.rel (0) target = $region17
    $region16: #{tpu_custom_call.1} parent=1 // pred_region
      _
    $region17: #{tpu_custom_call.1} parent=1 // pred_fallthru
      _
    // Predicated region
    $region18: #{tpu_custom_call.1} parent=1 // pred_check
      _
    $region19: #{tpu_custom_call.1} parent=1 // pred_check_branch
      %41 = sbr.rel (0) target = $region21
    $region20: #{tpu_custom_call.1} parent=1 // pred_region
      %42 = dma.done [#allocation4], 256
    $region21: #{tpu_custom_call.1} parent=1 // pred_fallthru
      _
    // Predicated region
    $region22: #{tpu_custom_call.1} parent=1 // pred_check
      _
    $region23: #{tpu_custom_call.1} parent=1 // pred_check_branch
      %44 = sbr.rel (0) target = $region25
    $region24: #{tpu_custom_call.1} parent=1 // pred_region
      %45 = dma.done [#allocation7], 256
    $region25: #{tpu_custom_call.1} parent=1 // pred_fallthru
      _
    %p47 = scmp.eq.s32.totalorder 0, 0
    // Predicated region
    $region26: #{tpu_custom_call.1} parent=1 // pred_check
      %p48 = pneg %p47
    $region27: #{tpu_custom_call.1} parent=1 // pred_check_branch
      %50 = sbr.rel (%p48) target = $region29
    $region28: #{tpu_custom_call.1} parent=1 // pred_region
      %vm51 = vcmask 785408
      %52 = vst.msk [vmem:[#allocation2] sm:$0xff] %vm51, 0.0
      %53 = vst.msk [vmem:[#allocation2 + $0x8] sm:$0xff] %vm51, 0.0
    $region29: #{tpu_custom_call.1} parent=1 // pred_fallthru
      _
    %v54 = vld [vmem:[#allocation3] sm:$0xff]
    %v55 = vld [vmem:[#allocation3 + $0x8] sm:$0xff]
    %vm56 = vcmask 261120
    %v57 = vsel %vm56, %v54, 0.0
    %58 = vadd.xlane.f32.xlu0 %v57
    %v59 = vpop.xlane.xlu0 %58
    %v60 = vsel %vm56, %v55, 0.0
    %61 = vadd.xlane.f32.xlu0 %v60
    %v62 = vpop.xlane.xlu0 %61
    %v63 = vrcp.pop 32.0
    %v64 = vmul.f32 %v59, %v63
    %v65 = vmul.f32 %v62, %v63
    %v66 = vsub.f32 %v54, %v64
    %v67 = vsub.f32 %v55, %v65
    %v68 = vmul.f32 %v66, %v66
    %v69 = vmul.f32 %v67, %v67
    %v70 = vsel %vm56, %v68, 0.0
    %71 = vadd.xlane.f32.xlu0 %v70
    %v72 = vpop.xlane.xlu0 %71
    %v73 = vsel %vm56, %v69, 0.0
    %74 = vadd.xlane.f32.xlu0 %v73
    %v75 = vpop.xlane.xlu0 %74
    %v76 = vrcp.pop 31.0
    %v77 = vmul.f32 %v72, %v76
    %v78 = vmul.f32 %v75, %v76
    %v79 = vrsqrt.pop %v77
    %v80 = vmul.f32 %v77, %v79
    %vm81 = vcmp.eq.f32.partialorder %v77, inf
    %v82 = vsel %vm81, %v77, %v80
    %vm83 = vcmp.eq.f32.partialorder %v77, 0.0
    %v84 = vand.u32 %v77, 2147483648
    %v85 = vsel %vm83, %v84, %v82
    %v86 = vrsqrt.pop %v78
    %v87 = vmul.f32 %v78, %v86
    %vm88 = vcmp.eq.f32.partialorder %v78, inf
    %v89 = vsel %vm88, %v78, %v87
    %vm90 = vcmp.eq.f32.partialorder %v78, 0.0
    %v91 = vand.u32 %v78, 2147483648
    %v92 = vsel %vm90, %v91, %v89
    %v93 = vadd.f32 %v85, 1e-06
    %v94 = vadd.f32 %v92, 1e-06
    %v95 = vrcp.pop %v93
    %v96 = vmul.f32 1.0, %v95
    %v97 = vrcp.pop %v94
    %v98 = vmul.f32 1.0, %v97
    %v99 = vld [vmem:[%s2] sm:$0x1]
    %v100 = vmul.f32 %v66, %v96
    %v101 = vmul.f32 %v67, %v98
    %v103 = vlaneseq
    %v104 = vshrl.u32 %v103, 7
    %v105 = vsub.s32 0, %v104
    %v106 = vrot.slane %v99, %v105
    %v108 = vmul.f32 %v106, %v100
    %v109 = vmul.f32 %v106, %v101
    %v110 = vld [vmem:[%s3] sm:$0x1]
    %v112 = vlaneseq
    %v113 = vshrl.u32 %v112, 7
    %v114 = vsub.s32 0, %v113
    %v115 = vrot.slane %v110, %v114
    %v117 = vadd.f32 %v108, %v115
    %v118 = vadd.f32 %v109, %v115
    %v119 = vld [vmem:[#allocation2] sm:$0xff]
    %v120 = vld [vmem:[#allocation2 + $0x8] sm:$0xff]
    %v121 = vpack.c.bf16 %v118, %v117
    %v122 = vld [vmem:[#allocation6] sm:$0xf]
    %v123 = vld [vmem:[#allocation6 + $0x4] sm:$0xf]
    %v124 = vld [vmem:[#allocation6 + $0x8] sm:$0xf]
    %v125 = vld [vmem:[#allocation6 + $0xc] sm:$0xf]
    %v130 = vunpack.c.l.b16 %v122
    %v131 = vunpack.c.l.b16 %v123
    %v132 = vunpack.c.l.b16 %v124
    %v133 = vunpack.c.l.b16 %v125
    %v134 = vpack.c.b16 %v131, %v130
    %v135 = vpack.c.b16 %v133, %v132
    %v139 = vsel %vm56, %v121, 0
    %141 = vmatprep.subr.bf16.mxu0 0
    %142 = vmatpush1.bf16.msra.mxu0 %v134
    %143 = vmatprep.subr.bf16.mxu0 0
    %144 = vmatpush1.bf16.msra.mxu0 %v135
    %145 = vmatprep.subr.bf16.mxu0 0
    %146 = vmatpush1.bf16.msra.mxu0 0
    %147 = vmatprep.subr.bf16.mxu0 0
    %148 = vmatpush1.bf16.msra.mxu0 0
    %149 = vmatprep.subr.bf16.mxu0 0
    %150 = vmatpush1.bf16.msra.mxu0 0
    %151 = vmatprep.subr.bf16.mxu0 0
    %152 = vmatpush1.bf16.msra.mxu0 0
    %153 = vmatprep.subr.bf16.mxu0 0
    %154 = vmatpush1.bf16.msra.mxu0 0
    %155 = vmatprep.subr.bf16.mxu0 0
    %156 = vmatpush1.bf16.msra.mxu0 0
    %157 = vmatprep.subr.bf16.mxu0 0
    %158 = vmatpush1.bf16.msra.mxu0 0
    %159 = vmatprep.subr.bf16.mxu0 0
    %160 = vmatpush1.bf16.msra.mxu0 0
    %161 = vmatprep.subr.bf16.mxu0 0
    %162 = vmatpush1.bf16.msra.mxu0 0
    %163 = vmatprep.subr.bf16.mxu0 0
    %164 = vmatpush1.bf16.msra.mxu0 0
    %165 = vmatprep.subr.bf16.mxu0 0
    %166 = vmatpush1.bf16.msra.mxu0 0
    %167 = vmatprep.subr.bf16.mxu0 0
    %168 = vmatpush1.bf16.msra.mxu0 0
    %169 = vmatprep.subr.bf16.mxu0 0
    %170 = vmatpush1.bf16.msra.mxu0 0
    %171 = vmatprep.subr.bf16.mxu0 0
    %172 = vmatpush1.bf16.msra.mxu0 0
    %173 = vmatprep.mubr.bf16.mxu0 0
    %174 = vmatmul.mubr.bf16.gmra.mrb[0].mxu0 %v139
    %v175 = vpop.f32.mrb[0].mxu0
    %v176 = vadd.f32 0.0, %v175
    %v177 = vpop.f32.mrb[0].mxu0
    %v178 = vpop.f32.mrb[0].mxu0
    %v179 = vadd.f32 0.0, %v178
    %v180 = vpop.f32.mrb[0].mxu0
    %181 = vdwg.mxu0
    %v182 = vadd.f32 %v119, %v176
    %v183 = vadd.f32 %v120, %v179
    %vm184 = vcmask 785408
    %185 = vst.msk [vmem:[#allocation2] sm:$0xff] %vm184, %v182
    %186 = vst.msk [vmem:[#allocation2 + $0x8] sm:$0xff] %vm184, %v183
    // Predicated region
    $region30: #{tpu_custom_call.1} parent=1 // pred_check
      %p187 = pneg %p47
    $region31: #{tpu_custom_call.1} parent=1 // pred_check_branch
      %189 = sbr.rel (%p187) target = $region33
    $region32: #{tpu_custom_call.1} parent=1 // pred_region
      %v190 = vld [vmem:[#allocation2] sm:$0xff]
      %v191 = vld [vmem:[#allocation2 + $0x8] sm:$0xff]
      %v192 = vpack.c.bf16 %v191, %v190
      %v194 = vunpack.c.l.b16 %v192
      %v195 = vunpack.c.h.b16 %v192
      %v196 = vpack.c.b16 %v194, %v194
      %v197 = vpack.c.b16 %v195, %v195
      %vm200 = vcmask 781312
      %201 = vst.msk [vmem:[#allocation8] sm:$0xf] %vm200, %v196
      %202 = vst.msk [vmem:[#allocation8 + $0x4] sm:$0xf] %vm200, %v197
    $region33: #{tpu_custom_call.1} parent=1 // pred_fallthru
      _
    // Predicated region
    $region34: #{tpu_custom_call.1} parent=1 // pred_check
      _
    $region35: #{tpu_custom_call.1} parent=1 // pred_check_branch
      %204 = sbr.rel (0) target = $region37
    $region36: #{tpu_custom_call.1} parent=1 // pred_region
      %s206 = ssub.s32 128, 128
      %207 = vsyncadd [#allocation5], %s206
      %s208 = sshll.u32 [#allocation8], 4
      %s209 = int_to_ptr.vmem [resolvable:$true] %s208
      %214 = dma.vmem_to_hbm [thread:$0]  %s209, 128, %s4, [#allocation5], 64, 64, 4
    $region37: #{tpu_custom_call.1} parent=1 // pred_fallthru
      _
    // Predicated region
    $region38: #{tpu_custom_call.1} parent=1 // pred_check
      _
    $region39: #{tpu_custom_call.1} parent=1 // pred_check_branch
      %216 = sbr.rel (0) target = $region41
    $region40: #{tpu_custom_call.1} parent=1 // pred_region
      %217 = dma.done [#allocation5], 128
    $region41: #{tpu_custom_call.1} parent=1 // pred_fallthru
      _
    %218 = vsyncpa [#allocation4], 1
    %219 = vsyncpa [#allocation7], 1
    %220 = vsyncpa [#allocation5], 1

</llo_original>
